<compile_context>
chip_gen: v5e
topology: v5e:2x2
jax: 0.10.0
libtpu: 0.0.40
codegen_flags: <defaults>
</compile_context>

<pallas_src>
import jax
import jax.numpy as jnp
from jax import lax
from jax.experimental import pallas as pl
from jax.experimental.pallas import tpu as pltpu


# ---------------------------------------------------------------------------
# Shared in-kernel math: one problem -> scalar f32 loss.
# ---------------------------------------------------------------------------
def _mset_math(x, labels_col, full_t):
    # x:          (N, D) f32
    # labels_col: (N, 1) int32
    # full_t:     (C, C) f32
    n, d = x.shape
    c = full_t.shape[0]

    # Fused label gather: T = full_T[labels][:, labels] = E @ full_T @ E^T,
    # with one-hot E built from an in-kernel iota compare.
    class_iota = lax.broadcasted_iota(jnp.int32, (n, c), 1)            # (N, C)
    e = (class_iota == labels_col).astype(jnp.float32)                  # (N, C)
    tmp = lax.dot_general(e, full_t, (((1,), (0,)), ((), ())),
                          preferred_element_type=jnp.float32)           # (N, C)
    t = lax.dot_general(tmp, e, (((1,), (1,)), ((), ())),
                        preferred_element_type=jnp.float32)             # (N, N)

    # Center columns (mean over dim=0).
    mean = jnp.sum(x, axis=0, keepdims=True) * (1.0 / n)                # (1, D)
    xc = x - mean                                                       # (N, D)

    # cov_q = xc @ xc^T / D  (contract lane axis of both operands, no transpose).
    cov = lax.dot_general(xc, xc, (((1,), (1,)), ((), ())),
                          preferred_element_type=jnp.float32) * (1.0 / d)

    diff = cov - t
    return jnp.sum(diff * diff) * (1.0 / (n * n))


def _flops_per_problem(n, d, c):
    return (2 * n * c * c          # E @ full_T
            + 2 * n * n * c        # ... @ E^T
            + 2 * n * n * d        # xc @ xc^T
            + 3 * n * d            # mean + center
            + 3 * n * n)           # diff, square, sum


# ---------------------------------------------------------------------------
# Single-problem kernel (exact module forward): grid-less, SMEM scalar sink.
# ---------------------------------------------------------------------------
def _mset_kernel_single(x_ref, labels_ref, full_t_ref, out_ref):
    loss = _mset_math(x_ref[...].astype(jnp.float32),
                      labels_ref[...],
                      full_t_ref[...].astype(jnp.float32))
    out_ref[0, 0] = loss


def mset_loss(batch, labels, full_T):
    """Single-problem forward: batch (N, D), labels (N,), full_T (C, C) -> scalar."""
    n_classes, n_characters = batch.shape
    n_total = full_T.shape[0]
    assert full_T.shape == (n_total, n_total)
    assert labels.shape == (n_classes,)

    labels_col = labels.astype(jnp.int32).reshape(n_classes, 1)

    flops = _flops_per_problem(n_classes, n_characters, n_total)
    bytes_accessed = 4 * (n_classes * n_characters + n_total * n_total
                          + n_classes + 1)

    out = pl.pallas_call(
        _mset_kernel_single,
        out_shape=jax.ShapeDtypeStruct((1, 1), jnp.float32),
        in_specs=[
            pl.BlockSpec((n_classes, n_characters), lambda: (0, 0)),
            pl.BlockSpec((n_classes, 1), lambda: (0, 0)),
            pl.BlockSpec((n_total, n_total), lambda: (0, 0)),
        ],
        out_specs=pl.BlockSpec(memory_space=pltpu.MemorySpace.SMEM),
        cost_estimate=pl.CostEstimate(flops=flops, transcendentals=0,
                                      bytes_accessed=bytes_accessed),
    )(batch, labels_col, full_T)
    return out[0, 0]


# ---------------------------------------------------------------------------
# Batched kernel: one program per problem, batch axis sharded across TCs.
# ---------------------------------------------------------------------------
def _mset_kernel_batched(x_ref, labels_ref, full_t_ref, out_ref):
    # x_ref:      (N, D)   VMEM (leading batch dim squeezed by BlockSpec)
    # labels_ref: (N, 1)   VMEM int32
    # full_t_ref: (C, C)   VMEM (same block every iteration -> fetched once)
    # out_ref:    (8, 128) VMEM f32 — this program's own lane-dense tile
    loss = _mset_math(x_ref[...].astype(jnp.float32),
                      labels_ref[...],
                      full_t_ref[...].astype(jnp.float32))
    out_ref[...] = jnp.full(out_ref.shape, loss, dtype=jnp.float32)


def mset_loss_batched(batch, labels, full_T):
    """Batched forward.

    batch:  (B, N, D) float32   — B independent mset problems
    labels: (B, N)    int32
    full_T: (C, C)    float32   — shared class-similarity table
    returns: (B,) float32 per-problem losses
    """
    b, n_classes, n_characters = batch.shape
    n_total = full_T.shape[0]
    assert full_T.shape == (n_total, n_total)
    assert labels.shape == (b, n_classes)

    labels_col = labels.astype(jnp.int32).reshape(b, n_classes, 1)

    flops = b * _flops_per_problem(n_classes, n_characters, n_total)
    bytes_accessed = (4 * b * (n_classes * n_characters + n_classes + 8 * 128)
                      + 4 * n_total * n_total)

    out = pl.pallas_call(
        _mset_kernel_batched,
        out_shape=jax.ShapeDtypeStruct((b, 8, 128), jnp.float32),
        grid=(b,),
        in_specs=[
            pl.BlockSpec((None, n_classes, n_characters), lambda i: (i, 0, 0)),
            pl.BlockSpec((None, n_classes, 1), lambda i: (i, 0, 0)),
            pl.BlockSpec((n_total, n_total), lambda i: (0, 0)),
        ],
        out_specs=pl.BlockSpec((None, 8, 128), lambda i: (i, 0, 0)),
        compiler_params=pltpu.CompilerParams(
            dimension_semantics=("parallel",)),
        cost_estimate=pl.CostEstimate(flops=flops, transcendentals=0,
                                      bytes_accessed=bytes_accessed),
    )(batch, labels_col, full_T)
    return out[:, 0, 0]


# ---------------------------------------------------------------------------
# Pure-JAX reference (mirrors the PyTorch forward, including the gather).
# ---------------------------------------------------------------------------
def mset_loss_ref(batch, labels, full_T):
    T = full_T[labels][:, labels]
    n_classes, n_characters = batch.shape
    xc = batch - batch.mean(axis=0, keepdims=True)
    cov_q = (xc @ xc.T) / n_characters
    return jnp.mean((cov_q - T) ** 2)


if __name__ == "__main__":
    key = jax.random.PRNGKey(0)
    k_batch, k_full_T, k_labels = jax.random.split(key, 3)

    B = 4                  # number of stacked problems for the batched path
    n_classes = 8          # batch rows (one embedding/prototype per class)
    n_characters = 32      # feature dimension
    n_total_classes = 16   # size of the full_T lookup table

    # Deterministic synthetic inputs.
    batch = jax.random.normal(k_batch, (B, n_classes, n_characters),
                              dtype=jnp.float32)
    full_T = jax.random.normal(k_full_T, (n_total_classes, n_total_classes),
                               dtype=jnp.float32)
    full_T = 0.5 * (full_T + full_T.T)  # symmetric class-similarity matrix
    labels = jax.random.randint(k_labels, (B, n_classes), 0, n_total_classes)

    # --- single-problem path (exact module forward) ---
    loss_single = mset_loss(batch[0], labels[0], full_T)
    jax.block_until_ready(loss_single)
    ref_single = mset_loss_ref(batch[0], labels[0], full_T)
    assert jnp.allclose(loss_single, ref_single, rtol=1e-5, atol=1e-5), (
        loss_single, ref_single)

    # --- batched path: B problems, one pallas_call ---
    losses = mset_loss_batched(batch, labels, full_T)
    jax.block_until_ready(losses)
    refs = jnp.stack([mset_loss_ref(batch[i], labels[i], full_T)
                      for i in range(B)])
    assert jnp.allclose(losses, refs, rtol=1e-5, atol=1e-5), (losses, refs)

    print("KERNEL_OK")
</pallas_src>

<mosaic_0001>
module attributes {stable_mosaic.version = 11 : i64} {
  func.func @_mset_kernel_single(%arg0: memref<8x32xf32, #tpu.memory_space<vmem>>, %arg1: memref<8x1xi32, #tpu.memory_space<vmem>>, %arg2: memref<16x16xf32, #tpu.memory_space<vmem>>, %arg3: memref<1x1xf32, #tpu.memory_space<smem>>) attributes {dimension_semantics = [], scalar_prefetch = 0 : i64, scratch_operands = 0 : i64, tpu.core_type = #tpu.core_type<tc>} {
    %c0 = arith.constant 0 : index
    %c0_0 = arith.constant 0 : index
    %0 = vector.load %arg0[%c0, %c0_0] : memref<8x32xf32, #tpu.memory_space<vmem>>, vector<8x32xf32>
    %c0_1 = arith.constant 0 : index
    %c0_2 = arith.constant 0 : index
    %1 = vector.load %arg1[%c0_1, %c0_2] : memref<8x1xi32, #tpu.memory_space<vmem>>, vector<8x1xi32>
    %c0_3 = arith.constant 0 : index
    %c0_4 = arith.constant 0 : index
    %2 = vector.load %arg2[%c0_3, %c0_4] : memref<16x16xf32, #tpu.memory_space<vmem>>, vector<16x16xf32>
    %3 = tpu.iota {dimensions = array<i32: 1>} : vector<8x16xi32>
    %4 = vector.broadcast %1 : vector<8x1xi32> to vector<8x16xi32>
    %5 = arith.cmpi eq, %3, %4 : vector<8x16xi32>
    %6 = arith.extui %5 : vector<8x16xi1> to vector<8x16xi32>
    %7 = arith.sitofp %6 : vector<8x16xi32> to vector<8x16xf32>
    %cst = arith.constant dense<0.000000e+00> : vector<8x16xf32>
    %8 = tpu.matmul %7, %2, %cst {dimension_numbers = #tpu.dot_dimension_numbers<[1], [0], [0], [1], [0, 0, 1, 1], [], []>} : vector<8x16xf32>, vector<16x16xf32>, vector<8x16xf32> -> vector<8x16xf32>
    %cst_5 = arith.constant dense<0.000000e+00> : vector<8x8xf32>
    %9 = tpu.matmul %8, %7, %cst_5 {dimension_numbers = #tpu.dot_dimension_numbers<[1], [1], [0], [0], [0, 0, 1, 0], [], []>} : vector<8x16xf32>, vector<8x16xf32>, vector<8x8xf32> -> vector<8x8xf32>
    %cst_6 = arith.constant dense<0.000000e+00> : vector<32xf32>
    %10 = vector.multi_reduction <add>, %0, %cst_6 [0] : vector<8x32xf32> to vector<32xf32>
    %11 = vector.shape_cast %10 : vector<32xf32> to vector<1x32xf32>
    %cst_7 = arith.constant 1.250000e-01 : f32
    %12 = vector.broadcast %cst_7 : f32 to vector<1x32xf32>
    %13 = arith.mulf %11, %12 : vector<1x32xf32>
    %14 = vector.broadcast %13 : vector<1x32xf32> to vector<8x32xf32>
    %15 = arith.subf %0, %14 : vector<8x32xf32>
    %cst_8 = arith.constant dense<0.000000e+00> : vector<8x8xf32>
    %16 = tpu.matmul %15, %15, %cst_8 {dimension_numbers = #tpu.dot_dimension_numbers<[1], [1], [0], [0], [0, 0, 1, 0], [], []>} : vector<8x32xf32>, vector<8x32xf32>, vector<8x8xf32> -> vector<8x8xf32>
    %cst_9 = arith.constant 3.125000e-02 : f32
    %17 = vector.broadcast %cst_9 : f32 to vector<8x8xf32>
    %18 = arith.mulf %16, %17 : vector<8x8xf32>
    %19 = arith.subf %18, %9 : vector<8x8xf32>
    %20 = arith.mulf %19, %19 : vector<8x8xf32>
    %21 = vector.shape_cast %20 : vector<8x8xf32> to vector<1x8x8xf32>
    %cst_10 = arith.constant dense<0.000000e+00> : vector<1xf32>
    %22 = vector.multi_reduction <add>, %21, %cst_10 [1, 2] : vector<1x8x8xf32> to vector<1xf32>
    %23 = vector.shape_cast %22 : vector<1xf32> to vector<1x1x1xf32>
    %24 = vector.extract %23[0, 0, 0] : f32 from vector<1x1x1xf32>
    %cst_11 = arith.constant 1.562500e-02 : f32
    %25 = arith.mulf %24, %cst_11 : f32
    %c0_12 = arith.constant 0 : index
    %c0_13 = arith.constant 0 : index
    %26 = memref.load %arg3[%c0_12, %c0_13] : memref<1x1xf32, #tpu.memory_space<smem>>
    memref.store %25, %arg3[%c0_12, %c0_13] : memref<1x1xf32, #tpu.memory_space<smem>>
    return
  }
}

</mosaic_0001>

<llo_original>
// kernel: tpu_custom_call.1
$region0: #{tpu_custom_call.1}
  #allocation0 [shape = 'u32[]', space=smem, size = 0x4, offset = 0x4, fixed_abs, tag = 'smem constant byte address 0x4 - core index']
  #allocation1 [shape = 'u32[72,128]{1,0:T(1,128)}', space=vmem, size = 0x9000, scoped, tag = 'internal scratch']
  %s0 = inlined_call_operand.vmem [shape: f32[8,32], index: 0, kind: input, shape index: {}]
  %s1 = inlined_call_operand.vmem [shape: s32[8,1], index: 1, kind: input, shape index: {}]
  %s2 = inlined_call_operand.hbm [shape: f32[16,16], index: 2, kind: input, shape index: {}]
  %s3 = inlined_call_operand.hbm [shape: f32[1,1], index: 3, kind: output, shape index: {}]
  %s4 = sld [smem:[#allocation0]]
  $region26: #{tpu_custom_call.1} parent=0
    _
  %s6 = ssub.s32 1, %s4
  %s7 = scalar_select 0, %s6, %s4
  $region1: #{tpu_custom_call.1} parent=0
    #allocation2 [shape = 'u8[8192]{0}', space=vmem, size = 0x2000, scoped, tag = 'input window, operand 2, single buffered']
    #allocation3 [shape = 's32[1]{0}', space=sflag, size = 0x4, scoped, tag = 'scoped memory for tpu_custom_call.1']
    #allocation4 [shape = 's32[1]{0}', space=sflag, size = 0x4, scoped, tag = 'scoped memory for tpu_custom_call.1']
    #allocation5 [shape = 'u8[512]{0}', space=smem, size = 0x200, scoped, tag = 'output window, operand 0, single buffered']
    %8 = vsyncpa [#allocation3], 0
    %9 = vsyncpa [#allocation4], 0
    // Predicated region
    $region2: #{tpu_custom_call.1} parent=1 // pred_check
      _
    $region3: #{tpu_custom_call.1} parent=1 // pred_check_branch
      %11 = sbr.rel (0) target = $region5
    $region4: #{tpu_custom_call.1} parent=1 // pred_region
      _
    $region5: #{tpu_custom_call.1} parent=1 // pred_fallthru
      _
    // Predicated region
    $region6: #{tpu_custom_call.1} parent=1 // pred_check
      _
    $region7: #{tpu_custom_call.1} parent=1 // pred_check_branch
      %13 = sbr.rel (0) target = $region9
    $region8: #{tpu_custom_call.1} parent=1 // pred_region
      _
    $region9: #{tpu_custom_call.1} parent=1 // pred_fallthru
      _
    // Predicated region
    $region10: #{tpu_custom_call.1} parent=1 // pred_check
      _
    $region11: #{tpu_custom_call.1} parent=1 // pred_check_branch
      %15 = sbr.rel (0) target = $region13
    $region12: #{tpu_custom_call.1} parent=1 // pred_region
      %17 = vsyncadd [#allocation3], 0
      %s18 = sshll.u32 %s2, 4
      %s19 = int_to_ptr.hbm [resolvable:$true] %s18
      %s20 = sshll.u32 [#allocation2], 4
      %s21 = int_to_ptr.vmem [resolvable:$true] %s20
      %26 = dma.hbm_to_vmem [thread:$0]  %s19, 256, %s21, [#allocation3], 128, 128, 8
    $region13: #{tpu_custom_call.1} parent=1 // pred_fallthru
      _
    // Predicated region
    $region14: #{tpu_custom_call.1} parent=1 // pred_check
      _
    $region15: #{tpu_custom_call.1} parent=1 // pred_check_branch
      %28 = sbr.rel (0) target = $region17
    $region16: #{tpu_custom_call.1} parent=1 // pred_region
      %30 = dma.done [#allocation3], 256
    $region17: #{tpu_custom_call.1} parent=1 // pred_fallthru
      _
    %v31 = vld [vmem:[%s0] sm:$0xff]
    %v32 = vld [vmem:[%s1] sm:$0xff]
    %v33 = vld [vmem:[#allocation2] sm:$0xff]
    %v34 = vld [vmem:[#allocation2 + $0x8] sm:$0xff]
    %v35 = vlaneseq
    %v36 = vand.u32 %v35, 127
    %37 = vset.pattern.permute.xlu0 0
    %38 = vperm.xlu0 %37, %v32
    %v39 = vpop.permute.xlu0 %38
    %vm40 = vcmp.eq.s32.totalorder %v36, %v39
    %v41 = vsel %vm40, 1, 0
    %v42 = vcvt.s32.f32 %v41
    %vm43 = vcmask 130048
    %v45 = vsel %vm43, %v42, 0
    %47 = vmatpush.msra.mxu0 0.0
    %48 = vmatpush.msra.mxu0 0.0
    %49 = vmatpush.msra.mxu0 0.0
    %50 = vmatpush.msra.mxu0 0.0
    %51 = vmatpush.msra.mxu0 0.0
    %52 = vmatpush.msra.mxu0 0.0
    %53 = vmatpush.msra.mxu0 0.0
    %54 = vmatpush.msra.mxu0 0.0
    %55 = vmatpush.msra.mxu0 0.0
    %56 = vmatpush.msra.mxu0 0.0
    %57 = vmatpush.msra.mxu0 0.0
    %58 = vmatpush.msra.mxu0 0.0
    %59 = vmatpush.msra.mxu0 0.0
    %60 = vmatpush.msra.mxu0 0.0
    %61 = vmatpush.msra.mxu0 %v34
    %62 = vmatpush.msra.mxu0 %v33
    %63 = vmatmul.f32.gmra.mxu0 %v45
    %v64 = vpop.f32.mrf.mxu0
    %v65 = vadd.f32 0.0, %v64
    %66 = vdwg.mxu0
    %v68 = vsel %vm43, %v65, 0
    %70 = vmatpush.xpose.msra.mxu0 0.0
    %71 = vmatpush.xpose.msra.mxu0 0.0
    %72 = vmatpush.xpose.msra.mxu0 0.0
    %73 = vmatpush.xpose.msra.mxu0 0.0
    %74 = vmatpush.xpose.msra.mxu0 0.0
    %75 = vmatpush.xpose.msra.mxu0 0.0
    %76 = vmatpush.xpose.msra.mxu0 0.0
    %77 = vmatpush.xpose.msra.mxu0 0.0
    %78 = vmatpush.xpose.msra.mxu0 0.0
    %79 = vmatpush.xpose.msra.mxu0 0.0
    %80 = vmatpush.xpose.msra.mxu0 0.0
    %81 = vmatpush.xpose.msra.mxu0 0.0
    %82 = vmatpush.xpose.msra.mxu0 0.0
    %83 = vmatpush.xpose.msra.mxu0 0.0
    %84 = vmatpush.xpose.msra.mxu0 0.0
    %85 = vmatpush.xpose.msra.mxu0 %v45
    %86 = vmatmul.f32.gmra.mxu0 %v68
    %v87 = vpop.f32.mrf.mxu0
    %v88 = vadd.f32 0.0, %v87
    %89 = vdwg.mxu0
    %vm90 = vcmask 261120
    %v91 = vsel %vm90, %v31, 0.0
    %v92 = vrot.slane %v91, 4
    %v93 = vadd.f32 %v91, %v92
    %v94 = vrot.slane %v93, 2
    %v95 = vadd.f32 %v93, %v94
    %v96 = vrot.slane %v95, 1
    %v97 = vadd.f32 %v95, %v96
    %v98 = vmul.f32 %v97, 0.125
    %v99 = vsub.f32 %v31, %v98
    %v101 = vsel %vm90, %v99, 0
    %103 = vmatpush.xpose.msra.mxu0 0.0
    %104 = vmatpush.xpose.msra.mxu0 0.0
    %105 = vmatpush.xpose.msra.mxu0 0.0
    %106 = vmatpush.xpose.msra.mxu0 0.0
    %107 = vmatpush.xpose.msra.mxu0 0.0
    %108 = vmatpush.xpose.msra.mxu0 0.0
    %109 = vmatpush.xpose.msra.mxu0 0.0
    %110 = vmatpush.xpose.msra.mxu0 0.0
    %111 = vmatpush.xpose.msra.mxu0 0.0
    %112 = vmatpush.xpose.msra.mxu0 0.0
    %113 = vmatpush.xpose.msra.mxu0 0.0
    %114 = vmatpush.xpose.msra.mxu0 0.0
    %115 = vmatpush.xpose.msra.mxu0 0.0
    %116 = vmatpush.xpose.msra.mxu0 0.0
    %117 = vmatpush.xpose.msra.mxu0 0.0
    %118 = vmatpush.xpose.msra.mxu0 %v101
    %119 = vmatmul.f32.gmra.mxu0 %v101
    %v120 = vpop.f32.mrf.mxu0
    %v121 = vadd.f32 0.0, %v120
    %122 = vdwg.mxu0
    %v123 = vmul.f32 %v121, 0.03125
    %v124 = vsub.f32 %v123, %v88
    %v125 = vmul.f32 %v124, %v124
    %vm126 = vcmask 64512
    %v127 = vsel %vm126, %v125, 0.0
    %128 = vadd.xlane.f32.xlu0 %v127
    %v129 = vpop.xlane.xlu0 %128
    %v130 = vrot.slane %v129, 4
    %v131 = vadd.f32 %v129, %v130
    %v132 = vrot.slane %v131, 2
    %v133 = vadd.f32 %v131, %v132
    %v134 = vrot.slane %v133, 1
    %v135 = vadd.f32 %v133, %v134
    %s136 = vtos %v135
    %s137 = smul.f32 %s136, 0.015625
    %s138 = scalar_lea.smem [#allocation5], 0
    %139 = sst [smem:[%s138]] %s137
    // Predicated region
    $region18: #{tpu_custom_call.1} parent=1 // pred_check
      _
    $region19: #{tpu_custom_call.1} parent=1 // pred_check_branch
      %141 = sbr.rel (0) target = $region21
    $region20: #{tpu_custom_call.1} parent=1 // pred_region
      %143 = vsyncadd [#allocation4], 0
      %s145 = sshll.u32 %s3, 4
      %s146 = int_to_ptr.hbm [resolvable:$true] %s145
      %148 = dma.smem_to_hbm [#allocation5], 16, %s146, [#allocation4]
    $region21: #{tpu_custom_call.1} parent=1 // pred_fallthru
      _
    // Predicated region
    $region22: #{tpu_custom_call.1} parent=1 // pred_check
      _
    $region23: #{tpu_custom_call.1} parent=1 // pred_check_branch
      %150 = sbr.rel (0) target = $region25
    $region24: #{tpu_custom_call.1} parent=1 // pred_region
      %152 = dma.done [#allocation4], 16
    $region25: #{tpu_custom_call.1} parent=1 // pred_fallthru
      _
    %153 = sfence
    %154 = vsyncpa [#allocation3], 1
    %155 = vsyncpa [#allocation4], 1

</llo_original>
